<compile_context>
chip_gen: v7x
topology: tpu7x:2x2x1
jax: 0.10.0
libtpu: 0.0.40
codegen_flags: <defaults>
</compile_context>

<pallas_src>
import jax
import jax.numpy as jnp
from jax import lax
from jax.experimental import pallas as pl
from jax.experimental.pallas import tpu as pltpu

EPS = 1e-5  # PyTorch BatchNorm2d default


def _make_kernel(H, W, P_pad, P_true, Cin_p, C0_p, C1_p, mcp):
    inv_P = 1.0 / P_true
    # tap order t = kh*3 + kw; flat-spatial offset for stride=1 / dilation=1
    offs = tuple((t // 3 - 1) * W + (t % 3 - 1) for t in range(9))

    def kernel(x_ref, bnp_ref, w1c_ref, w2_ref, o_ref):
        # ---- boundary masks generated in-kernel (zero HBM mask traffic) ----
        lane = lax.broadcasted_iota(jnp.int32, (1, P_pad), 1)
        w_pos = lane % W           # column index within a row
        r_pos = lane % (H * W)     # flat position within one image
        w_ok_m1 = w_pos >= 1             # tap dw = -1 stays in-image
        w_ok_p1 = w_pos < (W - 1)        # tap dw = +1
        h_ok_m1 = r_pos >= W             # tap dh = -1
        h_ok_p1 = r_pos < (H - 1) * W    # tap dh = +1

        tap_masks = []
        for t in range(9):
            dh, dw = t // 3 - 1, t % 3 - 1
            m = None
            if dh == -1:
                m = h_ok_m1
            elif dh == 1:
                m = h_ok_p1
            if dw == -1:
                m = w_ok_m1 if m is None else m & w_ok_m1
            elif dw == 1:
                m = w_ok_p1 if m is None else m & w_ok_p1
            tap_masks.append(m)          # None == centre tap / always valid

        def im2col(src):
            # 9 lane-axis rolls (XLU, cheap) + per-tap boundary masking (VPU select)
            pieces = []
            for off, m in zip(offs, tap_masks):
                piece = src if off == 0 else pltpu.roll(src, shift=(-off) % P_pad, axis=1)
                if m is not None:
                    piece = jnp.where(m, piece, 0.0)
                pieces.append(piece)
            return jnp.concatenate(pieces, axis=0)        # (9*C, P_pad)

        # ---- packed BN params: rows [g1; b1; g2; b2], each padded to mcp ----
        g1 = bnp_ref[0:Cin_p, :]
        b1 = bnp_ref[mcp:mcp + Cin_p, :]
        g2 = bnp_ref[2 * mcp:2 * mcp + C0_p, :]
        b2 = bnp_ref[3 * mcp:3 * mcp + C0_p, :]

        def bn_relu(x, g, b):
            # single-pass training-mode batch stats over the true N*H*W lanes
            s = jnp.sum(x, axis=1, keepdims=True)
            ss = jnp.sum(x * x, axis=1, keepdims=True)
            m = s * inv_P
            v = jnp.maximum(ss * inv_P - m * m, 0.0)      # biased variance
            scale = g * lax.rsqrt(v + EPS)
            return jnp.maximum(x * scale + (b - m * scale), 0.0)

        # ---- bn1 + ReLU (f32 elementwise) ----
        bn1 = bn_relu(x_ref[...], g1, b1)

        # ---- conv1 (3x3) + folded 1x1 projection: single bf16 MXU matmul ----
        p1 = im2col(bn1).astype(jnp.bfloat16)
        y = jnp.dot(w1c_ref[...], p1, preferred_element_type=jnp.float32)
        y1 = y[0:C0_p, :]
        shortcut = y[C0_p:C0_p + C1_p, :]

        if P_pad != P_true:
            # keep padded-lane garbage out of bn2 statistics
            y1 = jnp.where(lane < P_true, y1, 0.0)

        # ---- bn2 + ReLU ----
        a2 = bn_relu(y1, g2, b2)

        # ---- conv2 (3x3): single bf16 MXU matmul ----
        p2 = im2col(a2).astype(jnp.bfloat16)
        y2 = jnp.dot(w2_ref[...], p2, preferred_element_type=jnp.float32)

        # residual add (out.add_(shortcut)); full-lane unmasked store
        o_ref[...] = y2 + shortcut

    return kernel


def identity_residual_block(x_nchw, params):
    """Forward of IdentityResidualBlock(in_ch, channels=[C0, C1], stride=1)."""
    N, Cin, H, W = x_nchw.shape
    w1 = params["conv1_w"]          # (C0, Cin, 3, 3)
    w2 = params["conv2_w"]          # (C1, C0, 3, 3)
    wp = params["proj_w"]           # (C1, Cin, 1, 1)
    C0, C1 = w1.shape[0], w2.shape[0]
    P_true = N * H * W
    P_pad = ((P_true + 127) // 128) * 128                # lane-align spatial
    rup = lambda c: ((c + 7) // 8) * 8                   # sublane-align channels
    Cin_p, C0_p, C1_p = rup(Cin), rup(C0), rup(C1)
    mcp = max(Cin_p, C0_p)

    # ---- glue: NCHW -> (C, P) lane-dense layout, zero-padded ----
    x2d = jnp.transpose(x_nchw, (1, 0, 2, 3)).reshape(Cin, P_true).astype(jnp.float32)
    x2d = jnp.pad(x2d, ((0, Cin_p - Cin), (0, P_pad - P_true)))

    def prep_conv3x3(w, cout_p, cin_p):
        cout, cin = w.shape[0], w.shape[1]
        w_t = jnp.transpose(w, (0, 2, 3, 1)).astype(jnp.float32)   # (cout, kh, kw, cin)
        w_t = jnp.pad(w_t, ((0, cout_p - cout), (0, 0), (0, 0), (0, cin_p - cin)))
        return w_t.reshape(cout_p, 9 * cin_p)

    w1_flat = prep_conv3x3(w1, C0_p, Cin_p)                        # (C0_p, 9*Cin_p)
    w2_flat = prep_conv3x3(w2, C1_p, C0_p).astype(jnp.bfloat16)    # (C1_p, 9*C0_p)
    # fold the 1x1 projection into the centre tap (t=4) of an enlarged conv1 weight
    wp_rows = jnp.zeros((C1_p, 9 * Cin_p), jnp.float32)
    wp_rows = wp_rows.at[:C1, 4 * Cin_p:4 * Cin_p + Cin].set(wp[:, :, 0, 0].astype(jnp.float32))
    w1cat = jnp.concatenate([w1_flat, wp_rows], axis=0).astype(jnp.bfloat16)  # (C0_p+C1_p, 9*Cin_p)

    # ---- pack all four BN parameter vectors into one small VMEM column ----
    def pad_vec(v, n, cv=0.0):
        return jnp.pad(v.astype(jnp.float32), (0, n - v.shape[0]), constant_values=cv)

    bnp = jnp.concatenate([pad_vec(params["bn1_g"], mcp, 1.0),
                           pad_vec(params["bn1_b"], mcp),
                           pad_vec(params["bn2_g"], mcp, 1.0),
                           pad_vec(params["bn2_b"], mcp)]).reshape(4 * mcp, 1)

    kernel = _make_kernel(H, W, P_pad, P_true, Cin_p, C0_p, C1_p, mcp)
    vmem = pl.BlockSpec(memory_space=pltpu.MemorySpace.VMEM)

    # per-generation VMEM budget (v5e/v6e: 128 MiB, v7x: 64 MiB -> ~48 MiB usable)
    try:
        vmem_cap = int(pltpu.get_tpu_info().vmem_capacity_bytes)
    except Exception:  # conservative fallback if the query is unavailable
        vmem_cap = 64 * 1024 * 1024
    vmem_limit = max(32 * 1024 * 1024,
                     min(vmem_cap - 16 * 1024 * 1024, 112 * 1024 * 1024))

    inputs = (x2d, bnp, w1cat, w2_flat)
    out_bytes = C1_p * P_pad * 4
    cost = pl.CostEstimate(
        flops=2 * P_pad * (9 * Cin_p * (C0_p + C1_p) + 9 * C0_p * C1_p),
        transcendentals=Cin_p + C0_p,                    # the two rsqrt vectors
        bytes_accessed=sum(int(a.size) * a.dtype.itemsize for a in inputs) + out_bytes,
    )

    out2d = pl.pallas_call(
        kernel,
        out_shape=jax.ShapeDtypeStruct((C1_p, P_pad), jnp.float32),
        in_specs=[vmem] * len(inputs),
        out_specs=vmem,
        compiler_params=pltpu.CompilerParams(vmem_limit_bytes=vmem_limit),
        cost_estimate=cost,
    )(*inputs)

    out = out2d[:C1, :P_true].reshape(C1, N, H, W)
    return jnp.transpose(out, (1, 0, 2, 3))


def reference(x, params):
    """Pure-JAX reference matching the PyTorch module (training-mode BN, f32)."""
    def bnrelu(v, g, b):
        m = v.mean(axis=(0, 2, 3), keepdims=True)
        var = v.var(axis=(0, 2, 3), keepdims=True)       # biased, like PyTorch BN
        return jnp.maximum(
            (v - m) / jnp.sqrt(var + EPS) * g.reshape(1, -1, 1, 1)
            + b.reshape(1, -1, 1, 1), 0.0)

    dn = ("NCHW", "OIHW", "NCHW")
    bn1 = bnrelu(x, params["bn1_g"], params["bn1_b"])
    shortcut = lax.conv_general_dilated(bn1, params["proj_w"], (1, 1), "VALID",
                                        dimension_numbers=dn)
    y1 = lax.conv_general_dilated(bn1, params["conv1_w"], (1, 1),
                                  ((1, 1), (1, 1)), dimension_numbers=dn)
    a2 = bnrelu(y1, params["bn2_g"], params["bn2_b"])
    y2 = lax.conv_general_dilated(a2, params["conv2_w"], (1, 1),
                                  ((1, 1), (1, 1)), dimension_numbers=dn)
    return y2 + shortcut


if __name__ == "__main__":
    # IdentityResidualBlock(in_channels=4, channels=[8, 8]) -> proj_conv needed
    N, Cin, H, W = 2, 4, 16, 16
    C0, C1 = 8, 8

    key = jax.random.PRNGKey(0)
    ks = jax.random.split(key, 9)
    x = jax.random.normal(ks[0], (N, Cin, H, W), jnp.float32)
    params = {
        "bn1_g": jax.random.uniform(ks[1], (Cin,), minval=0.5, maxval=1.5),
        "bn1_b": 0.1 * jax.random.normal(ks[2], (Cin,)),
        "conv1_w": 0.1 * jax.random.normal(ks[3], (C0, Cin, 3, 3)),
        "bn2_g": jax.random.uniform(ks[4], (C0,), minval=0.5, maxval=1.5),
        "bn2_b": 0.1 * jax.random.normal(ks[5], (C0,)),
        "conv2_w": 0.1 * jax.random.normal(ks[6], (C1, C0, 3, 3)),
        "proj_w": 0.1 * jax.random.normal(ks[7], (C1, Cin, 1, 1)),
    }

    out = identity_residual_block(x, params)
    out = jax.block_until_ready(out)

    ref = jax.block_until_ready(reference(x, params))
    max_err = float(jnp.max(jnp.abs(out - ref)))
    assert out.shape == (N, C1, H, W), out.shape
    # Tolerance reflects bf16 MXU operands (f32 accumulation) through two convs
    # + BN normalization vs. the all-f32 reference; observed error is ~1e-2 max.
    assert max_err < 2e-2, f"max abs err {max_err}"

    print("KERNEL_OK")
</pallas_src>

<mosaic_0001>
module attributes {stable_mosaic.version = 11 : i64} {
  func.func @kernel(%arg0: memref<8x512xf32, #tpu.memory_space<vmem>>, %arg1: memref<32x1xf32, #tpu.memory_space<vmem>>, %arg2: memref<16x72xbf16, #tpu.memory_space<vmem>>, %arg3: memref<8x72xbf16, #tpu.memory_space<vmem>>, %arg4: memref<8x512xf32, #tpu.memory_space<vmem>>) attributes {dimension_semantics = [], scalar_prefetch = 0 : i64, scratch_operands = 0 : i64, tpu.core_type = #tpu.core_type<tc>} {
    %0 = tpu.iota {dimensions = array<i32: 1>} : vector<1x512xi32>
    %c16_i32 = arith.constant 16 : i32
    %c0_i32 = arith.constant 0 : i32
    %1 = arith.cmpi eq, %c16_i32, %c0_i32 : i32
    %c1_i32 = arith.constant 1 : i32
    %2 = arith.select %1, %c1_i32, %c16_i32 : i32
    %3 = vector.broadcast %2 : i32 to vector<1x512xi32>
    %4 = arith.remsi %0, %3 : vector<1x512xi32>
    %c0_i32_0 = arith.constant 0 : i32
    %5 = vector.broadcast %c0_i32_0 : i32 to vector<1x512xi32>
    %6 = arith.cmpi ne, %4, %5 : vector<1x512xi32>
    %c0_i32_1 = arith.constant 0 : i32
    %7 = vector.broadcast %c0_i32_1 : i32 to vector<1x512xi32>
    %8 = arith.cmpi slt, %4, %7 : vector<1x512xi32>
    %c0_i32_2 = arith.constant 0 : i32
    %9 = arith.cmpi slt, %2, %c0_i32_2 : i32
    %10 = vector.broadcast %9 : i1 to vector<1x512xi1>
    %11 = vector.broadcast %10 : vector<1x512xi1> to vector<1x512xi1>
    %12 = arith.xori %8, %11 : vector<1x512xi1>
    %13 = arith.andi %12, %6 : vector<1x512xi1>
    %14 = vector.broadcast %2 : i32 to vector<1x512xi32>
    %15 = arith.addi %4, %14 : vector<1x512xi32>
    %16 = arith.select %13, %15, %4 : vector<1x512xi1>, vector<1x512xi32>
    %c256_i32 = arith.constant 256 : i32
    %c0_i32_3 = arith.constant 0 : i32
    %17 = arith.cmpi eq, %c256_i32, %c0_i32_3 : i32
    %c1_i32_4 = arith.constant 1 : i32
    %18 = arith.select %17, %c1_i32_4, %c256_i32 : i32
    %19 = vector.broadcast %18 : i32 to vector<1x512xi32>
    %20 = arith.remsi %0, %19 : vector<1x512xi32>
    %c0_i32_5 = arith.constant 0 : i32
    %21 = vector.broadcast %c0_i32_5 : i32 to vector<1x512xi32>
    %22 = arith.cmpi ne, %20, %21 : vector<1x512xi32>
    %c0_i32_6 = arith.constant 0 : i32
    %23 = vector.broadcast %c0_i32_6 : i32 to vector<1x512xi32>
    %24 = arith.cmpi slt, %20, %23 : vector<1x512xi32>
    %c0_i32_7 = arith.constant 0 : i32
    %25 = arith.cmpi slt, %18, %c0_i32_7 : i32
    %26 = vector.broadcast %25 : i1 to vector<1x512xi1>
    %27 = vector.broadcast %26 : vector<1x512xi1> to vector<1x512xi1>
    %28 = arith.xori %24, %27 : vector<1x512xi1>
    %29 = arith.andi %28, %22 : vector<1x512xi1>
    %30 = vector.broadcast %18 : i32 to vector<1x512xi32>
    %31 = arith.addi %20, %30 : vector<1x512xi32>
    %32 = arith.select %29, %31, %20 : vector<1x512xi1>, vector<1x512xi32>
    %c1_i32_8 = arith.constant 1 : i32
    %33 = vector.broadcast %c1_i32_8 : i32 to vector<1x512xi32>
    %34 = arith.cmpi sge, %16, %33 : vector<1x512xi32>
    %c15_i32 = arith.constant 15 : i32
    %35 = vector.broadcast %c15_i32 : i32 to vector<1x512xi32>
    %36 = arith.cmpi slt, %16, %35 : vector<1x512xi32>
    %c16_i32_9 = arith.constant 16 : i32
    %37 = vector.broadcast %c16_i32_9 : i32 to vector<1x512xi32>
    %38 = arith.cmpi sge, %32, %37 : vector<1x512xi32>
    %c240_i32 = arith.constant 240 : i32
    %39 = vector.broadcast %c240_i32 : i32 to vector<1x512xi32>
    %40 = arith.cmpi slt, %32, %39 : vector<1x512xi32>
    %41 = arith.andi %38, %34 : vector<1x512xi1>
    %42 = arith.andi %38, %36 : vector<1x512xi1>
    %43 = arith.andi %40, %34 : vector<1x512xi1>
    %44 = arith.andi %40, %36 : vector<1x512xi1>
    %c0 = arith.constant 0 : index
    %c0_10 = arith.constant 0 : index
    %45 = vector.load %arg1[%c0, %c0_10] : memref<32x1xf32, #tpu.memory_space<vmem>>, vector<8x1xf32>
    %c8 = arith.constant 8 : index
    %c0_11 = arith.constant 0 : index
    %46 = vector.load %arg1[%c8, %c0_11] : memref<32x1xf32, #tpu.memory_space<vmem>>, vector<8x1xf32>
    %c16 = arith.constant 16 : index
    %c0_12 = arith.constant 0 : index
    %47 = vector.load %arg1[%c16, %c0_12] : memref<32x1xf32, #tpu.memory_space<vmem>>, vector<8x1xf32>
    %c24 = arith.constant 24 : index
    %c0_13 = arith.constant 0 : index
    %48 = vector.load %arg1[%c24, %c0_13] : memref<32x1xf32, #tpu.memory_space<vmem>>, vector<8x1xf32>
    %c0_14 = arith.constant 0 : index
    %c0_15 = arith.constant 0 : index
    %49 = vector.load %arg0[%c0_14, %c0_15] : memref<8x512xf32, #tpu.memory_space<vmem>>, vector<8x512xf32>
    %cst = arith.constant dense<0.000000e+00> : vector<8xf32>
    %50 = vector.multi_reduction <add>, %49, %cst [1] : vector<8x512xf32> to vector<8xf32>
    %51 = vector.shape_cast %50 : vector<8xf32> to vector<8x1xf32>
    %52 = arith.mulf %49, %49 : vector<8x512xf32>
    %cst_16 = arith.constant dense<0.000000e+00> : vector<8xf32>
    %53 = vector.multi_reduction <add>, %52, %cst_16 [1] : vector<8x512xf32> to vector<8xf32>
    %54 = vector.shape_cast %53 : vector<8xf32> to vector<8x1xf32>
    %cst_17 = arith.constant 0.001953125 : f32
    %55 = vector.broadcast %cst_17 : f32 to vector<8x1xf32>
    %56 = arith.mulf %51, %55 : vector<8x1xf32>
    %cst_18 = arith.constant 0.001953125 : f32
    %57 = vector.broadcast %cst_18 : f32 to vector<8x1xf32>
    %58 = arith.mulf %54, %57 : vector<8x1xf32>
    %59 = arith.mulf %56, %56 : vector<8x1xf32>
    %60 = arith.subf %58, %59 : vector<8x1xf32>
    %cst_19 = arith.constant 0.000000e+00 : f32
    %61 = vector.broadcast %cst_19 : f32 to vector<8x1xf32>
    %62 = arith.maximumf %60, %61 : vector<8x1xf32>
    %cst_20 = arith.constant 9.99999974E-6 : f32
    %63 = vector.broadcast %cst_20 : f32 to vector<8x1xf32>
    %64 = arith.addf %62, %63 : vector<8x1xf32>
    %65 = math.rsqrt %64 : vector<8x1xf32>
    %66 = arith.mulf %45, %65 : vector<8x1xf32>
    %67 = vector.broadcast %66 : vector<8x1xf32> to vector<8x512xf32>
    %68 = arith.mulf %49, %67 : vector<8x512xf32>
    %69 = arith.mulf %56, %66 : vector<8x1xf32>
    %70 = arith.subf %46, %69 : vector<8x1xf32>
    %71 = vector.broadcast %70 : vector<8x1xf32> to vector<8x512xf32>
    %72 = arith.addf %68, %71 : vector<8x512xf32>
    %cst_21 = arith.constant 0.000000e+00 : f32
    %73 = vector.broadcast %cst_21 : f32 to vector<8x512xf32>
    %74 = arith.maximumf %72, %73 : vector<8x512xf32>
    %c17_i32 = arith.constant 17 : i32
    %75 = tpu.dynamic_rotate %74 by %c17_i32 dim 1 : vector<8x512xf32>, i32 -> vector<8x512xf32>
    %cst_22 = arith.constant 0.000000e+00 : f32
    %76 = vector.shape_cast %41 : vector<1x512xi1> to vector<1x512xi1>
    %77 = vector.broadcast %76 : vector<1x512xi1> to vector<8x512xi1>
    %78 = vector.broadcast %cst_22 : f32 to vector<8x512xf32>
    %79 = arith.select %77, %75, %78 : vector<8x512xi1>, vector<8x512xf32>
    %c16_i32_23 = arith.constant 16 : i32
    %80 = tpu.dynamic_rotate %74 by %c16_i32_23 dim 1 : vector<8x512xf32>, i32 -> vector<8x512xf32>
    %cst_24 = arith.constant 0.000000e+00 : f32
    %81 = vector.shape_cast %38 : vector<1x512xi1> to vector<1x512xi1>
    %82 = vector.broadcast %81 : vector<1x512xi1> to vector<8x512xi1>
    %83 = vector.broadcast %cst_24 : f32 to vector<8x512xf32>
    %84 = arith.select %82, %80, %83 : vector<8x512xi1>, vector<8x512xf32>
    %c15_i32_25 = arith.constant 15 : i32
    %85 = tpu.dynamic_rotate %74 by %c15_i32_25 dim 1 : vector<8x512xf32>, i32 -> vector<8x512xf32>
    %cst_26 = arith.constant 0.000000e+00 : f32
    %86 = vector.shape_cast %42 : vector<1x512xi1> to vector<1x512xi1>
    %87 = vector.broadcast %86 : vector<1x512xi1> to vector<8x512xi1>
    %88 = vector.broadcast %cst_26 : f32 to vector<8x512xf32>
    %89 = arith.select %87, %85, %88 : vector<8x512xi1>, vector<8x512xf32>
    %c1_i32_27 = arith.constant 1 : i32
    %90 = tpu.dynamic_rotate %74 by %c1_i32_27 dim 1 : vector<8x512xf32>, i32 -> vector<8x512xf32>
    %cst_28 = arith.constant 0.000000e+00 : f32
    %91 = vector.shape_cast %34 : vector<1x512xi1> to vector<1x512xi1>
    %92 = vector.broadcast %91 : vector<1x512xi1> to vector<8x512xi1>
    %93 = vector.broadcast %cst_28 : f32 to vector<8x512xf32>
    %94 = arith.select %92, %90, %93 : vector<8x512xi1>, vector<8x512xf32>
    %c511_i32 = arith.constant 511 : i32
    %95 = tpu.dynamic_rotate %74 by %c511_i32 dim 1 : vector<8x512xf32>, i32 -> vector<8x512xf32>
    %cst_29 = arith.constant 0.000000e+00 : f32
    %96 = vector.shape_cast %36 : vector<1x512xi1> to vector<1x512xi1>
    %97 = vector.broadcast %96 : vector<1x512xi1> to vector<8x512xi1>
    %98 = vector.broadcast %cst_29 : f32 to vector<8x512xf32>
    %99 = arith.select %97, %95, %98 : vector<8x512xi1>, vector<8x512xf32>
    %c497_i32 = arith.constant 497 : i32
    %100 = tpu.dynamic_rotate %74 by %c497_i32 dim 1 : vector<8x512xf32>, i32 -> vector<8x512xf32>
    %cst_30 = arith.constant 0.000000e+00 : f32
    %101 = vector.shape_cast %43 : vector<1x512xi1> to vector<1x512xi1>
    %102 = vector.broadcast %101 : vector<1x512xi1> to vector<8x512xi1>
    %103 = vector.broadcast %cst_30 : f32 to vector<8x512xf32>
    %104 = arith.select %102, %100, %103 : vector<8x512xi1>, vector<8x512xf32>
    %c496_i32 = arith.constant 496 : i32
    %105 = tpu.dynamic_rotate %74 by %c496_i32 dim 1 : vector<8x512xf32>, i32 -> vector<8x512xf32>
    %cst_31 = arith.constant 0.000000e+00 : f32
    %106 = vector.shape_cast %40 : vector<1x512xi1> to vector<1x512xi1>
    %107 = vector.broadcast %106 : vector<1x512xi1> to vector<8x512xi1>
    %108 = vector.broadcast %cst_31 : f32 to vector<8x512xf32>
    %109 = arith.select %107, %105, %108 : vector<8x512xi1>, vector<8x512xf32>
    %c495_i32 = arith.constant 495 : i32
    %110 = tpu.dynamic_rotate %74 by %c495_i32 dim 1 : vector<8x512xf32>, i32 -> vector<8x512xf32>
    %cst_32 = arith.constant 0.000000e+00 : f32
    %111 = vector.shape_cast %44 : vector<1x512xi1> to vector<1x512xi1>
    %112 = vector.broadcast %111 : vector<1x512xi1> to vector<8x512xi1>
    %113 = vector.broadcast %cst_32 : f32 to vector<8x512xf32>
    %114 = arith.select %112, %110, %113 : vector<8x512xi1>, vector<8x512xf32>
    %115 = tpu.concatenate %79, %84, %89, %94, %74, %99, %104, %109, %114 in 0 : vector<8x512xf32>, vector<8x512xf32>, vector<8x512xf32>, vector<8x512xf32>, vector<8x512xf32>, vector<8x512xf32>, vector<8x512xf32>, vector<8x512xf32>, vector<8x512xf32> -> vector<72x512xf32>
    %116 = arith.truncf %115 : vector<72x512xf32> to vector<72x512xbf16>
    %c0_33 = arith.constant 0 : index
    %c0_34 = arith.constant 0 : index
    %117 = vector.load %arg2[%c0_33, %c0_34] : memref<16x72xbf16, #tpu.memory_space<vmem>>, vector<16x72xbf16>
    %cst_35 = arith.constant dense<0.000000e+00> : vector<16x512xf32>
    %118 = tpu.matmul %117, %116, %cst_35 {dimension_numbers = #tpu.dot_dimension_numbers<[1], [0], [0], [1], [0, 0, 1, 1], [], []>} : vector<16x72xbf16>, vector<72x512xbf16>, vector<16x512xf32> -> vector<16x512xf32>
    %119 = vector.extract_strided_slice %118 {offsets = [0, 0], sizes = [8, 512], strides = [1, 1]} : vector<16x512xf32> to vector<8x512xf32>
    %120 = vector.extract_strided_slice %118 {offsets = [8, 0], sizes = [8, 512], strides = [1, 1]} : vector<16x512xf32> to vector<8x512xf32>
    %cst_36 = arith.constant dense<0.000000e+00> : vector<8xf32>
    %121 = vector.multi_reduction <add>, %119, %cst_36 [1] : vector<8x512xf32> to vector<8xf32>
    %122 = vector.shape_cast %121 : vector<8xf32> to vector<8x1xf32>
    %123 = arith.mulf %119, %119 : vector<8x512xf32>
    %cst_37 = arith.constant dense<0.000000e+00> : vector<8xf32>
    %124 = vector.multi_reduction <add>, %123, %cst_37 [1] : vector<8x512xf32> to vector<8xf32>
    %125 = vector.shape_cast %124 : vector<8xf32> to vector<8x1xf32>
    %cst_38 = arith.constant 0.001953125 : f32
    %126 = vector.broadcast %cst_38 : f32 to vector<8x1xf32>
    %127 = arith.mulf %122, %126 : vector<8x1xf32>
    %cst_39 = arith.constant 0.001953125 : f32
    %128 = vector.broadcast %cst_39 : f32 to vector<8x1xf32>
    %129 = arith.mulf %125, %128 : vector<8x1xf32>
    %130 = arith.mulf %127, %127 : vector<8x1xf32>
    %131 = arith.subf %129, %130 : vector<8x1xf32>
    %cst_40 = arith.constant 0.000000e+00 : f32
    %132 = vector.broadcast %cst_40 : f32 to vector<8x1xf32>
    %133 = arith.maximumf %131, %132 : vector<8x1xf32>
    %cst_41 = arith.constant 9.99999974E-6 : f32
    %134 = vector.broadcast %cst_41 : f32 to vector<8x1xf32>
    %135 = arith.addf %133, %134 : vector<8x1xf32>
    %136 = math.rsqrt %135 : vector<8x1xf32>
    %137 = arith.mulf %47, %136 : vector<8x1xf32>
    %138 = vector.broadcast %137 : vector<8x1xf32> to vector<8x512xf32>
    %139 = arith.mulf %119, %138 : vector<8x512xf32>
    %140 = arith.mulf %127, %137 : vector<8x1xf32>
    %141 = arith.subf %48, %140 : vector<8x1xf32>
    %142 = vector.broadcast %141 : vector<8x1xf32> to vector<8x512xf32>
    %143 = arith.addf %139, %142 : vector<8x512xf32>
    %cst_42 = arith.constant 0.000000e+00 : f32
    %144 = vector.broadcast %cst_42 : f32 to vector<8x512xf32>
    %145 = arith.maximumf %143, %144 : vector<8x512xf32>
    %c17_i32_43 = arith.constant 17 : i32
    %146 = tpu.dynamic_rotate %145 by %c17_i32_43 dim 1 : vector<8x512xf32>, i32 -> vector<8x512xf32>
    %cst_44 = arith.constant 0.000000e+00 : f32
    %147 = vector.shape_cast %41 : vector<1x512xi1> to vector<1x512xi1>
    %148 = vector.broadcast %147 : vector<1x512xi1> to vector<8x512xi1>
    %149 = vector.broadcast %cst_44 : f32 to vector<8x512xf32>
    %150 = arith.select %148, %146, %149 : vector<8x512xi1>, vector<8x512xf32>
    %c16_i32_45 = arith.constant 16 : i32
    %151 = tpu.dynamic_rotate %145 by %c16_i32_45 dim 1 : vector<8x512xf32>, i32 -> vector<8x512xf32>
    %cst_46 = arith.constant 0.000000e+00 : f32
    %152 = vector.shape_cast %38 : vector<1x512xi1> to vector<1x512xi1>
    %153 = vector.broadcast %152 : vector<1x512xi1> to vector<8x512xi1>
    %154 = vector.broadcast %cst_46 : f32 to vector<8x512xf32>
    %155 = arith.select %153, %151, %154 : vector<8x512xi1>, vector<8x512xf32>
    %c15_i32_47 = arith.constant 15 : i32
    %156 = tpu.dynamic_rotate %145 by %c15_i32_47 dim 1 : vector<8x512xf32>, i32 -> vector<8x512xf32>
    %cst_48 = arith.constant 0.000000e+00 : f32
    %157 = vector.shape_cast %42 : vector<1x512xi1> to vector<1x512xi1>
    %158 = vector.broadcast %157 : vector<1x512xi1> to vector<8x512xi1>
    %159 = vector.broadcast %cst_48 : f32 to vector<8x512xf32>
    %160 = arith.select %158, %156, %159 : vector<8x512xi1>, vector<8x512xf32>
    %c1_i32_49 = arith.constant 1 : i32
    %161 = tpu.dynamic_rotate %145 by %c1_i32_49 dim 1 : vector<8x512xf32>, i32 -> vector<8x512xf32>
    %cst_50 = arith.constant 0.000000e+00 : f32
    %162 = vector.shape_cast %34 : vector<1x512xi1> to vector<1x512xi1>
    %163 = vector.broadcast %162 : vector<1x512xi1> to vector<8x512xi1>
    %164 = vector.broadcast %cst_50 : f32 to vector<8x512xf32>
    %165 = arith.select %163, %161, %164 : vector<8x512xi1>, vector<8x512xf32>
    %c511_i32_51 = arith.constant 511 : i32
    %166 = tpu.dynamic_rotate %145 by %c511_i32_51 dim 1 : vector<8x512xf32>, i32 -> vector<8x512xf32>
    %cst_52 = arith.constant 0.000000e+00 : f32
    %167 = vector.shape_cast %36 : vector<1x512xi1> to vector<1x512xi1>
    %168 = vector.broadcast %167 : vector<1x512xi1> to vector<8x512xi1>
    %169 = vector.broadcast %cst_52 : f32 to vector<8x512xf32>
    %170 = arith.select %168, %166, %169 : vector<8x512xi1>, vector<8x512xf32>
    %c497_i32_53 = arith.constant 497 : i32
    %171 = tpu.dynamic_rotate %145 by %c497_i32_53 dim 1 : vector<8x512xf32>, i32 -> vector<8x512xf32>
    %cst_54 = arith.constant 0.000000e+00 : f32
    %172 = vector.shape_cast %43 : vector<1x512xi1> to vector<1x512xi1>
    %173 = vector.broadcast %172 : vector<1x512xi1> to vector<8x512xi1>
    %174 = vector.broadcast %cst_54 : f32 to vector<8x512xf32>
    %175 = arith.select %173, %171, %174 : vector<8x512xi1>, vector<8x512xf32>
    %c496_i32_55 = arith.constant 496 : i32
    %176 = tpu.dynamic_rotate %145 by %c496_i32_55 dim 1 : vector<8x512xf32>, i32 -> vector<8x512xf32>
    %cst_56 = arith.constant 0.000000e+00 : f32
    %177 = vector.shape_cast %40 : vector<1x512xi1> to vector<1x512xi1>
    %178 = vector.broadcast %177 : vector<1x512xi1> to vector<8x512xi1>
    %179 = vector.broadcast %cst_56 : f32 to vector<8x512xf32>
    %180 = arith.select %178, %176, %179 : vector<8x512xi1>, vector<8x512xf32>
    %c495_i32_57 = arith.constant 495 : i32
    %181 = tpu.dynamic_rotate %145 by %c495_i32_57 dim 1 : vector<8x512xf32>, i32 -> vector<8x512xf32>
    %cst_58 = arith.constant 0.000000e+00 : f32
    %182 = vector.shape_cast %44 : vector<1x512xi1> to vector<1x512xi1>
    %183 = vector.broadcast %182 : vector<1x512xi1> to vector<8x512xi1>
    %184 = vector.broadcast %cst_58 : f32 to vector<8x512xf32>
    %185 = arith.select %183, %181, %184 : vector<8x512xi1>, vector<8x512xf32>
    %186 = tpu.concatenate %150, %155, %160, %165, %145, %170, %175, %180, %185 in 0 : vector<8x512xf32>, vector<8x512xf32>, vector<8x512xf32>, vector<8x512xf32>, vector<8x512xf32>, vector<8x512xf32>, vector<8x512xf32>, vector<8x512xf32>, vector<8x512xf32> -> vector<72x512xf32>
    %187 = arith.truncf %186 : vector<72x512xf32> to vector<72x512xbf16>
    %c0_59 = arith.constant 0 : index
    %c0_60 = arith.constant 0 : index
    %188 = vector.load %arg3[%c0_59, %c0_60] : memref<8x72xbf16, #tpu.memory_space<vmem>>, vector<8x72xbf16>
    %cst_61 = arith.constant dense<0.000000e+00> : vector<8x512xf32>
    %189 = tpu.matmul %188, %187, %cst_61 {dimension_numbers = #tpu.dot_dimension_numbers<[1], [0], [0], [1], [0, 0, 1, 1], [], []>} : vector<8x72xbf16>, vector<72x512xbf16>, vector<8x512xf32> -> vector<8x512xf32>
    %190 = arith.addf %189, %120 : vector<8x512xf32>
    %c0_62 = arith.constant 0 : index
    %c0_63 = arith.constant 0 : index
    %191 = vector.load %arg4[%c0_62, %c0_63] : memref<8x512xf32, #tpu.memory_space<vmem>>, vector<8x512xf32>
    tpu.vector_store %arg4[%c0_62, %c0_63], %190 {strides = array<i32>} : memref<8x512xf32, #tpu.memory_space<vmem>>, vector<8x512xf32>,
    return
  }
}

</mosaic_0001>

<llo_original>
// kernel: tpu_custom_call.1
$region0: #{tpu_custom_call.1}
  #allocation0 [shape = 'u32[]', space=smem, size = 0x4, offset = 0x4, fixed_abs, tag = 'smem constant byte address 0x4 - core index']
  #allocation1 [shape = 'u32[144,128]{1,0:T(1,128)}', space=vmem, size = 0x12000, scoped, tag = 'internal scratch']
  %s0 = inlined_call_operand.vmem [shape: f32[8,512], index: 0, kind: input, shape index: {}]
  %s1 = inlined_call_operand.vmem [shape: f32[32,1], index: 1, kind: input, shape index: {}]
  %s2 = inlined_call_operand.vmem [shape: bf16[16,72], index: 2, kind: input, shape index: {}]
  %s3 = inlined_call_operand.vmem [shape: bf16[8,72], index: 3, kind: input, shape index: {}]
  %s4 = inlined_call_operand.hbm [shape: f32[8,512], index: 4, kind: output, shape index: {}]
  %s5 = sld [smem:[#allocation0]]
  $region26: #{tpu_custom_call.1} parent=0
    _
  %s7 = ssub.s32 1, %s5
  %s8 = scalar_select 0, %s7, %s5
  $region1: #{tpu_custom_call.1} parent=0
    #allocation2 [shape = 'u8[16384]{0}', space=vmem, size = 0x4000, scoped, tag = 'output window, operand 0, single buffered']
    #allocation3 [shape = 's32[1]{0}', space=sflag, size = 0x4, scoped, tag = 'scoped memory for tpu_custom_call.1']
    %9 = vsyncpa [#allocation3], 0
    // Predicated region
    $region2: #{tpu_custom_call.1} parent=1 // pred_check
      _
    $region3: #{tpu_custom_call.1} parent=1 // pred_check_branch
      %11 = sbr.rel (0) target = $region5
    $region4: #{tpu_custom_call.1} parent=1 // pred_region
      _
    $region5: #{tpu_custom_call.1} parent=1 // pred_fallthru
      _
    // Predicated region
    $region6: #{tpu_custom_call.1} parent=1 // pred_check
      _
    $region7: #{tpu_custom_call.1} parent=1 // pred_check_branch
      %13 = sbr.rel (0) target = $region9
    $region8: #{tpu_custom_call.1} parent=1 // pred_region
      _
    $region9: #{tpu_custom_call.1} parent=1 // pred_fallthru
      _
    // Predicated region
    $region10: #{tpu_custom_call.1} parent=1 // pred_check
      _
    $region11: #{tpu_custom_call.1} parent=1 // pred_check_branch
      %15 = sbr.rel (0) target = $region13
    $region12: #{tpu_custom_call.1} parent=1 // pred_region
      _
    $region13: #{tpu_custom_call.1} parent=1 // pred_fallthru
      _
    // Predicated region
    $region14: #{tpu_custom_call.1} parent=1 // pred_check
      _
    $region15: #{tpu_custom_call.1} parent=1 // pred_check_branch
      %17 = sbr.rel (0) target = $region17
    $region16: #{tpu_custom_call.1} parent=1 // pred_region
      _
    $region17: #{tpu_custom_call.1} parent=1 // pred_fallthru
      _
    %v19 = vlaneseq
    %v20 = vand.u32 %v19, 127
    %v21 = vadd.s32 %v20, 128
    %v22 = vadd.s32 %v20, 256
    %v23 = vadd.s32 %v20, 384
    %vm24 = vcmp.lt.s32.totalorder %v20, 0
    %v25 = vsub.s32 0, %v20
    %v26 = vsel %vm24, %v25, %v20
    %v27 = vshrl.u32 %v26, 4
    %v28 = vand.u32 %v26, 15
    %v29 = vsub.s32 0, %v28
    %v30 = vsel %vm24, %v29, %v28
    %vm31 = vcmp.lt.s32.totalorder %v21, 0
    %v32 = vsub.s32 0, %v21
    %v33 = vsel %vm31, %v32, %v21
    %v34 = vshrl.u32 %v33, 4
    %v35 = vand.u32 %v33, 15
    %v36 = vsub.s32 0, %v35
    %v37 = vsel %vm31, %v36, %v35
    %vm38 = vcmp.lt.s32.totalorder %v22, 0
    %v39 = vsub.s32 0, %v22
    %v40 = vsel %vm38, %v39, %v22
    %v41 = vshrl.u32 %v40, 4
    %v42 = vand.u32 %v40, 15
    %v43 = vsub.s32 0, %v42
    %v44 = vsel %vm38, %v43, %v42
    %vm45 = vcmp.lt.s32.totalorder %v23, 0
    %v46 = vsub.s32 0, %v23
    %v47 = vsel %vm45, %v46, %v23
    %v48 = vshrl.u32 %v47, 4
    %v49 = vand.u32 %v47, 15
    %v50 = vsub.s32 0, %v49
    %v51 = vsel %vm45, %v50, %v49
    %vm52 = vcmp.ne.s32.totalorder %v30, 0
    %vm53 = vcmp.ne.s32.totalorder %v37, 0
    %vm54 = vcmp.ne.s32.totalorder %v44, 0
    %vm55 = vcmp.ne.s32.totalorder %v51, 0
    %vm56 = vcmp.lt.s32.totalorder %v30, 0
    %vm57 = vcmp.lt.s32.totalorder %v37, 0
    %vm58 = vcmp.lt.s32.totalorder %v44, 0
    %vm59 = vcmp.lt.s32.totalorder %v51, 0
    %vm60 = vmand %vm56, %vm52
    %vm61 = vmand %vm57, %vm53
    %vm62 = vmand %vm58, %vm54
    %vm63 = vmand %vm59, %vm55
    %v64 = vadd.s32 %v30, 16
    %v65 = vadd.s32 %v37, 16
    %v66 = vadd.s32 %v44, 16
    %v67 = vadd.s32 %v51, 16
    %v68 = vsel %vm60, %v64, %v30
    %v69 = vsel %vm61, %v65, %v37
    %v70 = vsel %vm62, %v66, %v44
    %v71 = vsel %vm63, %v67, %v51
    %vm72 = vcmp.lt.s32.totalorder %v20, 0
    %v73 = vsub.s32 0, %v20
    %v74 = vsel %vm72, %v73, %v20
    %v75 = vshrl.u32 %v74, 8
    %v76 = vand.u32 %v74, 255
    %v77 = vsub.s32 0, %v76
    %v78 = vsel %vm72, %v77, %v76
    %vm79 = vcmp.lt.s32.totalorder %v21, 0
    %v80 = vsub.s32 0, %v21
    %v81 = vsel %vm79, %v80, %v21
    %v82 = vshrl.u32 %v81, 8
    %v83 = vand.u32 %v81, 255
    %v84 = vsub.s32 0, %v83
    %v85 = vsel %vm79, %v84, %v83
    %vm86 = vcmp.lt.s32.totalorder %v22, 0
    %v87 = vsub.s32 0, %v22
    %v88 = vsel %vm86, %v87, %v22
    %v89 = vshrl.u32 %v88, 8
    %v90 = vand.u32 %v88, 255
    %v91 = vsub.s32 0, %v90
    %v92 = vsel %vm86, %v91, %v90
    %vm93 = vcmp.lt.s32.totalorder %v23, 0
    %v94 = vsub.s32 0, %v23
    %v95 = vsel %vm93, %v94, %v23
    %v96 = vshrl.u32 %v95, 8
    %v97 = vand.u32 %v95, 255
    %v98 = vsub.s32 0, %v97
    %v99 = vsel %vm93, %v98, %v97
    %vm100 = vcmp.ne.s32.totalorder %v78, 0
    %vm101 = vcmp.ne.s32.totalorder %v85, 0
    %vm102 = vcmp.ne.s32.totalorder %v92, 0
    %vm103 = vcmp.ne.s32.totalorder %v99, 0
    %vm104 = vcmp.lt.s32.totalorder %v78, 0
    %vm105 = vcmp.lt.s32.totalorder %v85, 0
    %vm106 = vcmp.lt.s32.totalorder %v92, 0
    %vm107 = vcmp.lt.s32.totalorder %v99, 0
    %vm108 = vmand %vm104, %vm100
    %vm109 = vmand %vm105, %vm101
    %vm110 = vmand %vm106, %vm102
    %vm111 = vmand %vm107, %vm103
    %v112 = vadd.s32 %v78, 256
    %v113 = vadd.s32 %v85, 256
    %v114 = vadd.s32 %v92, 256
    %v115 = vadd.s32 %v99, 256
    %v116 = vsel %vm108, %v112, %v78
    %v117 = vsel %vm109, %v113, %v85
    %v118 = vsel %vm110, %v114, %v92
    %v119 = vsel %vm111, %v115, %v99
    %vm120 = vcmp.ge.s32.totalorder %v68, 1
    %vm121 = vcmp.ge.s32.totalorder %v69, 1
    %vm122 = vcmp.ge.s32.totalorder %v70, 1
    %vm123 = vcmp.ge.s32.totalorder %v71, 1
    %vm124 = vcmp.lt.s32.totalorder %v68, 15
    %vm125 = vcmp.lt.s32.totalorder %v69, 15
    %vm126 = vcmp.lt.s32.totalorder %v70, 15
    %vm127 = vcmp.lt.s32.totalorder %v71, 15
    %vm128 = vcmp.ge.s32.totalorder %v116, 16
    %vm129 = vcmp.ge.s32.totalorder %v117, 16
    %vm130 = vcmp.ge.s32.totalorder %v118, 16
    %vm131 = vcmp.ge.s32.totalorder %v119, 16
    %vm132 = vcmp.lt.s32.totalorder %v116, 240
    %vm133 = vcmp.lt.s32.totalorder %v117, 240
    %vm134 = vcmp.lt.s32.totalorder %v118, 240
    %vm135 = vcmp.lt.s32.totalorder %v119, 240
    %vm136 = vmand %vm128, %vm120
    %vm137 = vmand %vm129, %vm121
    %vm138 = vmand %vm130, %vm122
    %vm139 = vmand %vm131, %vm123
    %vm140 = vmand %vm128, %vm124
    %vm141 = vmand %vm129, %vm125
    %vm142 = vmand %vm130, %vm126
    %vm143 = vmand %vm131, %vm127
    %vm144 = vmand %vm132, %vm120
    %vm145 = vmand %vm133, %vm121
    %vm146 = vmand %vm134, %vm122
    %vm147 = vmand %vm135, %vm123
    %vm148 = vmand %vm132, %vm124
    %vm149 = vmand %vm133, %vm125
    %vm150 = vmand %vm134, %vm126
    %vm151 = vmand %vm135, %vm127
    %v152 = vld [vmem:[%s1] sm:$0xff]
    %v153 = vld [vmem:[%s1 + $0x8] sm:$0xff]
    %v154 = vld [vmem:[%s1 + $0x10] sm:$0xff]
    %v155 = vld [vmem:[%s1 + $0x18] sm:$0xff]
    %v156 = vld [vmem:[%s0] sm:$0xff]
    %v157 = vld [vmem:[%s0 + $0x8] sm:$0xff]
    %v158 = vld [vmem:[%s0 + $0x10] sm:$0xff]
    %v159 = vld [vmem:[%s0 + $0x18] sm:$0xff]
    %v160 = vadd.f32 %v156, %v157
    %v161 = vadd.f32 %v160, %v158
    %v162 = vadd.f32 %v161, %v159
    %163 = vadd.xlane.f32.xlu0 %v162
    %v164 = vpop.xlane.xlu0 %163
    %v165 = vmul.f32 %v156, %v156
    %v166 = vmul.f32 %v157, %v157
    %v167 = vmul.f32 %v158, %v158
    %v168 = vmul.f32 %v159, %v159
    %v169 = vadd.f32 %v165, %v166
    %v170 = vadd.f32 %v169, %v167
    %v171 = vadd.f32 %v170, %v168
    %172 = vadd.xlane.f32.xlu0 %v171
    %v173 = vpop.xlane.xlu0 %172
    %v174 = vmul.f32 %v164, 0.001953125
    %v175 = vmul.f32 %v173, 0.001953125
    %v176 = vmul.f32 %v174, %v174
    %v177 = vsub.f32 %v175, %v176
    %v178 = vmax.f32 %v177, 0.0
    %v179 = vadd.f32 %v178, 1e-05
    %v180 = vrsqrt.pop %v179
    %v181 = vmul.f32 %v152, %v180
    %183 = vset.pattern.permute.xlu0 0
    %184 = vperm.xlu0 %183, %v181
    %v185 = vpop.permute.xlu0 %184
    %v187 = vmul.f32 %v156, %v185
    %v188 = vmul.f32 %v157, %v185
    %v189 = vmul.f32 %v158, %v185
    %v190 = vmul.f32 %v159, %v185
    %v191 = vmul.f32 %v174, %v181
    %v192 = vsub.f32 %v153, %v191
    %194 = vset.pattern.permute.xlu0 0
    %195 = vperm.xlu0 %194, %v192
    %v196 = vpop.permute.xlu0 %195
    %v198 = vadd.f32 %v187, %v196
    %v199 = vadd.f32 %v188, %v196
    %v200 = vadd.f32 %v189, %v196
    %v201 = vadd.f32 %v190, %v196
    %v202 = vmax.f32 %v198, 0.0
    %v203 = vmax.f32 %v199, 0.0
    %v204 = vmax.f32 %v200, 0.0
    %v205 = vmax.f32 %v201, 0.0
    %206 = vrot.lane.b32.xlu0 %v202, 17
    %v207 = vpop.permute.xlu0 %206
    %208 = vrot.lane.b32.xlu0 %v203, 17
    %v209 = vpop.permute.xlu0 %208
    %210 = vrot.lane.b32.xlu0 %v204, 17
    %v211 = vpop.permute.xlu0 %210
    %212 = vrot.lane.b32.xlu0 %v205, 17
    %v213 = vpop.permute.xlu0 %212
    %vm214 = vcmp.lt.s32.totalorder %v20, 17
    %v215 = vsel %vm214, %v211, %v213
    %v216 = vsel %vm214, %v209, %v211
    %v217 = vsel %vm214, %v207, %v209
    %v218 = vsel %vm214, %v213, %v207
    %v219 = vsel %vm136, 1, 0
    %v220 = vsel %vm137, 1, 0
    %v221 = vsel %vm138, 1, 0
    %v222 = vsel %vm139, 1, 0
    %vm223 = vcmp.eq.s32.totalorder %v219, 1
    %vm224 = vcmp.eq.s32.totalorder %v220, 1
    %vm225 = vcmp.eq.s32.totalorder %v221, 1
    %vm226 = vcmp.eq.s32.totalorder %v222, 1
    %v227 = vsel %vm223, %v218, 0.0
    %v228 = vsel %vm224, %v217, 0.0
    %v229 = vsel %vm225, %v216, 0.0
    %v230 = vsel %vm226, %v215, 0.0
    %231 = vrot.lane.b32.xlu0 %v202, 16
    %v232 = vpop.permute.xlu0 %231
    %233 = vrot.lane.b32.xlu0 %v203, 16
    %v234 = vpop.permute.xlu0 %233
    %235 = vrot.lane.b32.xlu0 %v204, 16
    %v236 = vpop.permute.xlu0 %235
    %237 = vrot.lane.b32.xlu0 %v205, 16
    %v238 = vpop.permute.xlu0 %237
    %vm239 = vcmp.lt.s32.totalorder %v20, 16
    %v240 = vsel %vm239, %v236, %v238
    %v241 = vsel %vm239, %v234, %v236
    %v242 = vsel %vm239, %v232, %v234
    %v243 = vsel %vm239, %v238, %v232
    %v244 = vsel %vm128, 1, 0
    %v245 = vsel %vm129, 1, 0
    %v246 = vsel %vm130, 1, 0
    %v247 = vsel %vm131, 1, 0
    %vm248 = vcmp.eq.s32.totalorder %v244, 1
    %vm249 = vcmp.eq.s32.totalorder %v245, 1
    %vm250 = vcmp.eq.s32.totalorder %v246, 1
    %vm251 = vcmp.eq.s32.totalorder %v247, 1
    %v252 = vsel %vm248, %v243, 0.0
    %v253 = vsel %vm249, %v242, 0.0
    %v254 = vsel %vm250, %v241, 0.0
    %v255 = vsel %vm251, %v240, 0.0
    %256 = vrot.lane.b32.xlu0 %v202, 15
    %v257 = vpop.permute.xlu0 %256
    %258 = vrot.lane.b32.xlu0 %v203, 15
    %v259 = vpop.permute.xlu0 %258
    %260 = vrot.lane.b32.xlu0 %v204, 15
    %v261 = vpop.permute.xlu0 %260
    %262 = vrot.lane.b32.xlu0 %v205, 15
    %v263 = vpop.permute.xlu0 %262
    %vm264 = vcmp.lt.s32.totalorder %v20, 15
    %v265 = vsel %vm264, %v261, %v263
    %v266 = vsel %vm264, %v259, %v261
    %v267 = vsel %vm264, %v257, %v259
    %v268 = vsel %vm264, %v263, %v257
    %v269 = vsel %vm140, 1, 0
    %v270 = vsel %vm141, 1, 0
    %v271 = vsel %vm142, 1, 0
    %v272 = vsel %vm143, 1, 0
    %vm273 = vcmp.eq.s32.totalorder %v269, 1
    %vm274 = vcmp.eq.s32.totalorder %v270, 1
    %vm275 = vcmp.eq.s32.totalorder %v271, 1
    %vm276 = vcmp.eq.s32.totalorder %v272, 1
    %v277 = vsel %vm273, %v268, 0.0
    %v278 = vsel %vm274, %v267, 0.0
    %v279 = vsel %vm275, %v266, 0.0
    %v280 = vsel %vm276, %v265, 0.0
    %281 = vrot.lane.b32.xlu0 %v202, 1
    %v282 = vpop.permute.xlu0 %281
    %283 = vrot.lane.b32.xlu0 %v203, 1
    %v284 = vpop.permute.xlu0 %283
    %285 = vrot.lane.b32.xlu0 %v204, 1
    %v286 = vpop.permute.xlu0 %285
    %287 = vrot.lane.b32.xlu0 %v205, 1
    %v288 = vpop.permute.xlu0 %287
    %vm289 = vcmp.lt.s32.totalorder %v20, 1
    %v290 = vsel %vm289, %v286, %v288
    %v291 = vsel %vm289, %v284, %v286
    %v292 = vsel %vm289, %v282, %v284
    %v293 = vsel %vm289, %v288, %v282
    %v294 = vsel %vm120, 1, 0
    %v295 = vsel %vm121, 1, 0
    %v296 = vsel %vm122, 1, 0
    %v297 = vsel %vm123, 1, 0
    %vm298 = vcmp.eq.s32.totalorder %v294, 1
    %vm299 = vcmp.eq.s32.totalorder %v295, 1
    %vm300 = vcmp.eq.s32.totalorder %v296, 1
    %vm301 = vcmp.eq.s32.totalorder %v297, 1
    %v302 = vsel %vm298, %v293, 0.0
    %v303 = vsel %vm299, %v292, 0.0
    %v304 = vsel %vm300, %v291, 0.0
    %v305 = vsel %vm301, %v290, 0.0
    %306 = vrot.lane.b32.xlu0 %v202, 127
    %v307 = vpop.permute.xlu0 %306
    %308 = vrot.lane.b32.xlu0 %v203, 127
    %v309 = vpop.permute.xlu0 %308
    %310 = vrot.lane.b32.xlu0 %v204, 127
    %v311 = vpop.permute.xlu0 %310
    %312 = vrot.lane.b32.xlu0 %v205, 127
    %v313 = vpop.permute.xlu0 %312
    %vm314 = vcmp.lt.s32.totalorder %v20, 127
    %v315 = vsel %vm314, %v311, %v313
    %v316 = vsel %vm314, %v309, %v311
    %v317 = vsel %vm314, %v307, %v309
    %v318 = vsel %vm314, %v313, %v307
    %v319 = vsel %vm124, 1, 0
    %v320 = vsel %vm125, 1, 0
    %v321 = vsel %vm126, 1, 0
    %v322 = vsel %vm127, 1, 0
    %vm323 = vcmp.eq.s32.totalorder %v319, 1
    %vm324 = vcmp.eq.s32.totalorder %v320, 1
    %vm325 = vcmp.eq.s32.totalorder %v321, 1
    %vm326 = vcmp.eq.s32.totalorder %v322, 1
    %v327 = vsel %vm323, %v317, 0.0
    %v328 = vsel %vm324, %v316, 0.0
    %v329 = vsel %vm325, %v315, 0.0
    %v330 = vsel %vm326, %v318, 0.0
    %331 = vrot.lane.b32.xlu0 %v202, 113
    %v332 = vpop.permute.xlu0 %331
    %333 = vrot.lane.b32.xlu0 %v203, 113
    %v334 = vpop.permute.xlu0 %333
    %335 = vrot.lane.b32.xlu0 %v204, 113
    %v336 = vpop.permute.xlu0 %335
    %337 = vrot.lane.b32.xlu0 %v205, 113
    %v338 = vpop.permute.xlu0 %337
    %vm339 = vcmp.lt.s32.totalorder %v20, 113
    %v340 = vsel %vm339, %v336, %v338
    %v341 = vsel %vm339, %v334, %v336
    %v342 = vsel %vm339, %v332, %v334
    %v343 = vsel %vm339, %v338, %v332
    %v344 = vsel %vm144, 1, 0
    %v345 = vsel %vm145, 1, 0
    %v346 = vsel %vm146, 1, 0
    %v347 = vsel %vm147, 1, 0
    %vm348 = vcmp.eq.s32.totalorder %v344, 1
    %vm349 = vcmp.eq.s32.totalorder %v345, 1
    %vm350 = vcmp.eq.s32.totalorder %v346, 1
    %vm351 = vcmp.eq.s32.totalorder %v347, 1
    %v352 = vsel %vm348, %v342, 0.0
    %v353 = vsel %vm349, %v341, 0.0
    %v354 = vsel %vm350, %v340, 0.0
    %v355 = vsel %vm351, %v343, 0.0
    %356 = vrot.lane.b32.xlu0 %v202, 112
    %v357 = vpop.permute.xlu0 %356
    %358 = vrot.lane.b32.xlu0 %v203, 112
    %v359 = vpop.permute.xlu0 %358
    %360 = vrot.lane.b32.xlu0 %v204, 112
    %v361 = vpop.permute.xlu0 %360
    %362 = vrot.lane.b32.xlu0 %v205, 112
    %v363 = vpop.permute.xlu0 %362
    %vm364 = vcmp.lt.s32.totalorder %v20, 112
    %v365 = vsel %vm364, %v361, %v363
    %v366 = vsel %vm364, %v359, %v361
    %v367 = vsel %vm364, %v357, %v359
    %v368 = vsel %vm364, %v363, %v357
    %v369 = vsel %vm132, 1, 0
    %v370 = vsel %vm133, 1, 0
    %v371 = vsel %vm134, 1, 0
    %v372 = vsel %vm135, 1, 0
    %vm373 = vcmp.eq.s32.totalorder %v369, 1
    %vm374 = vcmp.eq.s32.totalorder %v370, 1
    %vm375 = vcmp.eq.s32.totalorder %v371, 1
    %vm376 = vcmp.eq.s32.totalorder %v372, 1
    %v377 = vsel %vm373, %v367, 0.0
    %v378 = vsel %vm374, %v366, 0.0
    %v379 = vsel %vm375, %v365, 0.0
    %v380 = vsel %vm376, %v368, 0.0
    %381 = vrot.lane.b32.xlu0 %v202, 111
    %v382 = vpop.permute.xlu0 %381
    %383 = vrot.lane.b32.xlu0 %v203, 111
    %v384 = vpop.permute.xlu0 %383
    %385 = vrot.lane.b32.xlu0 %v204, 111
    %v386 = vpop.permute.xlu0 %385
    %387 = vrot.lane.b32.xlu0 %v205, 111
    %v388 = vpop.permute.xlu0 %387
    %vm389 = vcmp.lt.s32.totalorder %v20, 111
    %v390 = vsel %vm389, %v386, %v388
    %v391 = vsel %vm389, %v384, %v386
    %v392 = vsel %vm389, %v382, %v384
    %v393 = vsel %vm389, %v388, %v382
    %v394 = vsel %vm148, 1, 0
    %v395 = vsel %vm149, 1, 0
    %v396 = vsel %vm150, 1, 0
    %v397 = vsel %vm151, 1, 0
    %vm398 = vcmp.eq.s32.totalorder %v394, 1
    %vm399 = vcmp.eq.s32.totalorder %v395, 1
    %vm400 = vcmp.eq.s32.totalorder %v396, 1
    %vm401 = vcmp.eq.s32.totalorder %v397, 1
    %v402 = vsel %vm398, %v392, 0.0
    %v403 = vsel %vm399, %v391, 0.0
    %v404 = vsel %vm400, %v390, 0.0
    %v405 = vsel %vm401, %v393, 0.0
    %v406 = vpack.c.bf16 %v252, %v227
    %v407 = vpack.c.bf16 %v253, %v228
    %v408 = vpack.c.bf16 %v254, %v229
    %v409 = vpack.c.bf16 %v255, %v230
    %v410 = vpack.c.bf16 %v302, %v277
    %v411 = vpack.c.bf16 %v303, %v278
    %v412 = vpack.c.bf16 %v304, %v279
    %v413 = vpack.c.bf16 %v305, %v280
    %v414 = vpack.c.bf16 %v327, %v202
    %v415 = vpack.c.bf16 %v328, %v203
    %v416 = vpack.c.bf16 %v329, %v204
    %v417 = vpack.c.bf16 %v330, %v205
    %v418 = vpack.c.bf16 %v377, %v352
    %v419 = vpack.c.bf16 %v378, %v353
    %v420 = vpack.c.bf16 %v379, %v354
    %v421 = vpack.c.bf16 %v380, %v355
    %v422 = vpack.c.bf16 %v402, %v402
    %v423 = vpack.c.bf16 %v403, %v403
    %v424 = vpack.c.bf16 %v404, %v404
    %v425 = vpack.c.bf16 %v405, %v405
    %v426 = vld [vmem:[%s2] sm:$0xf]
    %v427 = vld [vmem:[%s2 + $0x4] sm:$0xf]
    %v430 = vunpack.c.l.b16 %v426
    %v431 = vunpack.c.l.b16 %v427
    %v432 = vpack.c.b16 %v431, %v430
    %vm433 = vcmask 588800
    %v435 = vsel %vm433, %v432, 0
    %vm437 = vcmask 1043456
    %v439 = vsel %vm437, %v422, 0
    %v442 = vsel %vm437, %v423, 0
    %v445 = vsel %vm437, %v424, 0
    %v448 = vsel %vm437, %v425, 0
    %450 = vmatprep.subr.bf16.mxu0 %v407
    %451 = vmatpush1.bf16.msra.mxu0 %v406
    %452 = vmatprep.subr.bf16.mxu0 %v411
    %453 = vmatpush1.bf16.msra.mxu0 %v410
    %454 = vmatprep.subr.bf16.mxu0 %v415
    %455 = vmatpush1.bf16.msra.mxu0 %v414
    %456 = vmatprep.subr.bf16.mxu0 %v419
    %457 = vmatpush1.bf16.msra.mxu0 %v418
    %458 = vmatprep.subr.bf16.mxu0 %v442
    %459 = vmatpush1.bf16.msra.mxu0 %v439
    %460 = vmatprep.subr.bf16.mxu0 0
    %461 = vmatpush1.bf16.msra.mxu0 0
    %462 = vmatprep.subr.bf16.mxu0 0
    %463 = vmatpush1.bf16.msra.mxu0 0
    %464 = vmatprep.subr.bf16.mxu0 0
    %465 = vmatpush1.bf16.msra.mxu0 0
    %466 = vmatprep.subr.bf16.mxu0 0
    %467 = vmatpush1.bf16.msra.mxu0 0
    %468 = vmatprep.subr.bf16.mxu0 0
    %469 = vmatpush1.bf16.msra.mxu0 0
    %470 = vmatprep.subr.bf16.mxu0 0
    %471 = vmatpush1.bf16.msra.mxu0 0
    %472 = vmatprep.subr.bf16.mxu0 0
    %473 = vmatpush1.bf16.msra.mxu0 0
    %474 = vmatprep.subr.bf16.mxu0 0
    %475 = vmatpush1.bf16.msra.mxu0 0
    %476 = vmatprep.subr.bf16.mxu0 0
    %477 = vmatpush1.bf16.msra.mxu0 0
    %478 = vmatprep.subr.bf16.mxu0 0
    %479 = vmatpush1.bf16.msra.mxu0 0
    %480 = vmatprep.subr.bf16.mxu0 0
    %481 = vmatpush1.bf16.msra.mxu0 0
    %482 = vmatprep.mubr.bf16.mxu0 0
    %483 = vmatmul.mubr.bf16.gmra.mrb[0].mxu0 %v435
    %v484 = vpop.f32.mrb[0].mxu0
    %v485 = vadd.f32 0.0, %v484
    %v486 = vpop.f32.mrb[0].mxu0
    %v487 = vadd.f32 0.0, %v486
    %v488 = vpop.f32.mrb[0].mxu0
    %v489 = vadd.f32 0.0, %v488
    %v490 = vpop.f32.mrb[0].mxu0
    %v491 = vadd.f32 0.0, %v490
    %492 = vdwg.mxu0
    %493 = vmatprep.subr.bf16.mxu0 %v409
    %494 = vmatpush1.bf16.msra.mxu0 %v408
    %495 = vmatprep.subr.bf16.mxu0 %v413
    %496 = vmatpush1.bf16.msra.mxu0 %v412
    %497 = vmatprep.subr.bf16.mxu0 %v417
    %498 = vmatpush1.bf16.msra.mxu0 %v416
    %499 = vmatprep.subr.bf16.mxu0 %v421
    %500 = vmatpush1.bf16.msra.mxu0 %v420
    %501 = vmatprep.subr.bf16.mxu0 %v448
    %502 = vmatpush1.bf16.msra.mxu0 %v445
    %503 = vmatprep.subr.bf16.mxu0 0
    %504 = vmatpush1.bf16.msra.mxu0 0
    %505 = vmatprep.subr.bf16.mxu0 0
    %506 = vmatpush1.bf16.msra.mxu0 0
    %507 = vmatprep.subr.bf16.mxu0 0
    %508 = vmatpush1.bf16.msra.mxu0 0
    %509 = vmatprep.subr.bf16.mxu0 0
    %510 = vmatpush1.bf16.msra.mxu0 0
    %511 = vmatprep.subr.bf16.mxu0 0
    %512 = vmatpush1.bf16.msra.mxu0 0
    %513 = vmatprep.subr.bf16.mxu0 0
    %514 = vmatpush1.bf16.msra.mxu0 0
    %515 = vmatprep.subr.bf16.mxu0 0
    %516 = vmatpush1.bf16.msra.mxu0 0
    %517 = vmatprep.subr.bf16.mxu0 0
    %518 = vmatpush1.bf16.msra.mxu0 0
    %519 = vmatprep.subr.bf16.mxu0 0
    %520 = vmatpush1.bf16.msra.mxu0 0
    %521 = vmatprep.subr.bf16.mxu0 0
    %522 = vmatpush1.bf16.msra.mxu0 0
    %523 = vmatprep.subr.bf16.mxu0 0
    %524 = vmatpush1.bf16.msra.mxu0 0
    %525 = vmatprep.mubr.bf16.mxu0 0
    %526 = vmatmul.mubr.bf16.gmra.mrb[0].mxu0 %v435
    %v527 = vpop.f32.mrb[0].mxu0
    %v528 = vadd.f32 0.0, %v527
    %v529 = vpop.f32.mrb[0].mxu0
    %v530 = vadd.f32 0.0, %v529
    %v531 = vpop.f32.mrb[0].mxu0
    %v532 = vadd.f32 0.0, %v531
    %v533 = vpop.f32.mrb[0].mxu0
    %v534 = vadd.f32 0.0, %v533
    %535 = vdwg.mxu0
    %v536 = vadd.f32 %v485, %v487
    %v537 = vadd.f32 %v536, %v528
    %v538 = vadd.f32 %v537, %v530
    %539 = vadd.xlane.f32.xlu0 %v538
    %v540 = vpop.xlane.xlu0 %539
    %v541 = vmul.f32 %v485, %v485
    %v542 = vmul.f32 %v487, %v487
    %v543 = vmul.f32 %v528, %v528
    %v544 = vmul.f32 %v530, %v530
    %v545 = vadd.f32 %v541, %v542
    %v546 = vadd.f32 %v545, %v543
    %v547 = vadd.f32 %v546, %v544
    %548 = vadd.xlane.f32.xlu0 %v547
    %v549 = vpop.xlane.xlu0 %548
    %v550 = vmul.f32 %v540, 0.001953125
    %v551 = vmul.f32 %v549, 0.001953125
    %v552 = vmul.f32 %v550, %v550
    %v553 = vsub.f32 %v551, %v552
    %v554 = vmax.f32 %v553, 0.0
    %v555 = vadd.f32 %v554, 1e-05
    %v556 = vrsqrt.pop %v555
    %v557 = vmul.f32 %v154, %v556
    %559 = vset.pattern.permute.xlu0 0
    %560 = vperm.xlu0 %559, %v557
    %v561 = vpop.permute.xlu0 %560
    %v563 = vmul.f32 %v485, %v561
    %v564 = vmul.f32 %v487, %v561
    %v565 = vmul.f32 %v528, %v561
    %v566 = vmul.f32 %v530, %v561
    %v567 = vmul.f32 %v550, %v557
    %v568 = vsub.f32 %v155, %v567
    %570 = vset.pattern.permute.xlu0 0
    %571 = vperm.xlu0 %570, %v568
    %v572 = vpop.permute.xlu0 %571
    %v574 = vadd.f32 %v563, %v572
    %v575 = vadd.f32 %v564, %v572
    %v576 = vadd.f32 %v565, %v572
    %v577 = vadd.f32 %v566, %v572
    %v578 = vmax.f32 %v574, 0.0
    %v579 = vmax.f32 %v575, 0.0
    %v580 = vmax.f32 %v576, 0.0
    %v581 = vmax.f32 %v577, 0.0
    %582 = vrot.lane.b32.xlu0 %v578, 17
    %v583 = vpop.permute.xlu0 %582
    %584 = vrot.lane.b32.xlu0 %v579, 17
    %v585 = vpop.permute.xlu0 %584
    %586 = vrot.lane.b32.xlu0 %v580, 17
    %v587 = vpop.permute.xlu0 %586
    %588 = vrot.lane.b32.xlu0 %v581, 17
    %v589 = vpop.permute.xlu0 %588
    %v590 = vsel %vm214, %v587, %v589
    %v591 = vsel %vm214, %v585, %v587
    %v592 = vsel %vm214, %v583, %v585
    %v593 = vsel %vm214, %v589, %v583
    %v594 = vsel %vm223, %v593, 0.0
    %v595 = vsel %vm224, %v592, 0.0
    %v596 = vsel %vm225, %v591, 0.0
    %v597 = vsel %vm226, %v590, 0.0
    %598 = vrot.lane.b32.xlu0 %v578, 16
    %v599 = vpop.permute.xlu0 %598
    %600 = vrot.lane.b32.xlu0 %v579, 16
    %v601 = vpop.permute.xlu0 %600
    %602 = vrot.lane.b32.xlu0 %v580, 16
    %v603 = vpop.permute.xlu0 %602
    %604 = vrot.lane.b32.xlu0 %v581, 16
    %v605 = vpop.permute.xlu0 %604
    %v606 = vsel %vm239, %v603, %v605
    %v607 = vsel %vm239, %v601, %v603
    %v608 = vsel %vm239, %v599, %v601
    %v609 = vsel %vm239, %v605, %v599
    %v610 = vsel %vm248, %v609, 0.0
    %v611 = vsel %vm249, %v608, 0.0
    %v612 = vsel %vm250, %v607, 0.0
    %v613 = vsel %vm251, %v606, 0.0
    %614 = vrot.lane.b32.xlu0 %v578, 15
    %v615 = vpop.permute.xlu0 %614
    %616 = vrot.lane.b32.xlu0 %v579, 15
    %v617 = vpop.permute.xlu0 %616
    %618 = vrot.lane.b32.xlu0 %v580, 15
    %v619 = vpop.permute.xlu0 %618
    %620 = vrot.lane.b32.xlu0 %v581, 15
    %v621 = vpop.permute.xlu0 %620
    %v622 = vsel %vm264, %v619, %v621
    %v623 = vsel %vm264, %v617, %v619
    %v624 = vsel %vm264, %v615, %v617
    %v625 = vsel %vm264, %v621, %v615
    %v626 = vsel %vm273, %v625, 0.0
    %v627 = vsel %vm274, %v624, 0.0
    %v628 = vsel %vm275, %v623, 0.0
    %v629 = vsel %vm276, %v622, 0.0
    %630 = vrot.lane.b32.xlu0 %v578, 1
    %v631 = vpop.permute.xlu0 %630
    %632 = vrot.lane.b32.xlu0 %v579, 1
    %v633 = vpop.permute.xlu0 %632
    %634 = vrot.lane.b32.xlu0 %v580, 1
    %v635 = vpop.permute.xlu0 %634
    %636 = vrot.lane.b32.xlu0 %v581, 1
    %v637 = vpop.permute.xlu0 %636
    %v638 = vsel %vm289, %v635, %v637
    %v639 = vsel %vm289, %v633, %v635
    %v640 = vsel %vm289, %v631, %v633
    %v641 = vsel %vm289, %v637, %v631
    %v642 = vsel %vm298, %v641, 0.0
    %v643 = vsel %vm299, %v640, 0.0
    %v644 = vsel %vm300, %v639, 0.0
    %v645 = vsel %vm301, %v638, 0.0
    %646 = vrot.lane.b32.xlu0 %v578, 127
    %v647 = vpop.permute.xlu0 %646
    %648 = vrot.lane.b32.xlu0 %v579, 127
    %v649 = vpop.permute.xlu0 %648
    %650 = vrot.lane.b32.xlu0 %v580, 127
    %v651 = vpop.permute.xlu0 %650
    %652 = vrot.lane.b32.xlu0 %v581, 127
    %v653 = vpop.permute.xlu0 %652
    %v654 = vsel %vm314, %v651, %v653
    %v655 = vsel %vm314, %v649, %v651
    %v656 = vsel %vm314, %v647, %v649
    %v657 = vsel %vm314, %v653, %v647
    %v658 = vsel %vm323, %v656, 0.0
    %v659 = vsel %vm324, %v655, 0.0
    %v660 = vsel %vm325, %v654, 0.0
    %v661 = vsel %vm326, %v657, 0.0
    %662 = vrot.lane.b32.xlu0 %v578, 113
    %v663 = vpop.permute.xlu0 %662
    %664 = vrot.lane.b32.xlu0 %v579, 113
    %v665 = vpop.permute.xlu0 %664
    %666 = vrot.lane.b32.xlu0 %v580, 113
    %v667 = vpop.permute.xlu0 %666
    %668 = vrot.lane.b32.xlu0 %v581, 113
    %v669 = vpop.permute.xlu0 %668
    %v670 = vsel %vm339, %v667, %v669
    %v671 = vsel %vm339, %v665, %v667
    %v672 = vsel %vm339, %v663, %v665
    %v673 = vsel %vm339, %v669, %v663
    %v674 = vsel %vm348, %v672, 0.0
    %v675 = vsel %vm349, %v671, 0.0
    %v676 = vsel %vm350, %v670, 0.0
    %v677 = vsel %vm351, %v673, 0.0
    %678 = vrot.lane.b32.xlu0 %v578, 112
    %v679 = vpop.permute.xlu0 %678
    %680 = vrot.lane.b32.xlu0 %v579, 112
    %v681 = vpop.permute.xlu0 %680
    %682 = vrot.lane.b32.xlu0 %v580, 112
    %v683 = vpop.permute.xlu0 %682
    %684 = vrot.lane.b32.xlu0 %v581, 112
    %v685 = vpop.permute.xlu0 %684
    %v686 = vsel %vm364, %v683, %v685
    %v687 = vsel %vm364, %v681, %v683
    %v688 = vsel %vm364, %v679, %v681
    %v689 = vsel %vm364, %v685, %v679
    %v690 = vsel %vm373, %v688, 0.0
    %v691 = vsel %vm374, %v687, 0.0
    %v692 = vsel %vm375, %v686, 0.0
    %v693 = vsel %vm376, %v689, 0.0
    %694 = vrot.lane.b32.xlu0 %v578, 111
    %v695 = vpop.permute.xlu0 %694
    %696 = vrot.lane.b32.xlu0 %v579, 111
    %v697 = vpop.permute.xlu0 %696
    %698 = vrot.lane.b32.xlu0 %v580, 111
    %v699 = vpop.permute.xlu0 %698
    %700 = vrot.lane.b32.xlu0 %v581, 111
    %v701 = vpop.permute.xlu0 %700
    %v702 = vsel %vm389, %v699, %v701
    %v703 = vsel %vm389, %v697, %v699
    %v704 = vsel %vm389, %v695, %v697
    %v705 = vsel %vm389, %v701, %v695
    %v706 = vsel %vm398, %v704, 0.0
    %v707 = vsel %vm399, %v703, 0.0
    %v708 = vsel %vm400, %v702, 0.0
    %v709 = vsel %vm401, %v705, 0.0
    %v710 = vpack.c.bf16 %v610, %v594
    %v711 = vpack.c.bf16 %v611, %v595
    %v712 = vpack.c.bf16 %v612, %v596
    %v713 = vpack.c.bf16 %v613, %v597
    %v714 = vpack.c.bf16 %v642, %v626
    %v715 = vpack.c.bf16 %v643, %v627
    %v716 = vpack.c.bf16 %v644, %v628
    %v717 = vpack.c.bf16 %v645, %v629
    %v718 = vpack.c.bf16 %v658, %v578
    %v719 = vpack.c.bf16 %v659, %v579
    %v720 = vpack.c.bf16 %v660, %v580
    %v721 = vpack.c.bf16 %v661, %v581
    %v722 = vpack.c.bf16 %v690, %v674
    %v723 = vpack.c.bf16 %v691, %v675
    %v724 = vpack.c.bf16 %v692, %v676
    %v725 = vpack.c.bf16 %v693, %v677
    %v726 = vpack.c.bf16 %v706, %v706
    %v727 = vpack.c.bf16 %v707, %v707
    %v728 = vpack.c.bf16 %v708, %v708
    %v729 = vpack.c.bf16 %v709, %v709
    %v730 = vld [vmem:[%s3] sm:$0xf]
    %v732 = vsel %vm433, %v730, 0
    %v735 = vsel %vm437, %v726, 0
    %v738 = vsel %vm437, %v727, 0
    %v741 = vsel %vm437, %v728, 0
    %v744 = vsel %vm437, %v729, 0
    %746 = vmatprep.subr.bf16.mxu0 %v711
    %747 = vmatpush1.bf16.msra.mxu0 %v710
    %748 = vmatprep.subr.bf16.mxu0 %v715
    %749 = vmatpush1.bf16.msra.mxu0 %v714
    %750 = vmatprep.subr.bf16.mxu0 %v719
    %751 = vmatpush1.bf16.msra.mxu0 %v718
    %752 = vmatprep.subr.bf16.mxu0 %v723
    %753 = vmatpush1.bf16.msra.mxu0 %v722
    %754 = vmatprep.subr.bf16.mxu0 %v738
    %755 = vmatpush1.bf16.msra.mxu0 %v735
    %756 = vmatprep.subr.bf16.mxu0 0
    %757 = vmatpush1.bf16.msra.mxu0 0
    %758 = vmatprep.subr.bf16.mxu0 0
    %759 = vmatpush1.bf16.msra.mxu0 0
    %760 = vmatprep.subr.bf16.mxu0 0
    %761 = vmatpush1.bf16.msra.mxu0 0
    %762 = vmatprep.subr.bf16.mxu0 0
    %763 = vmatpush1.bf16.msra.mxu0 0
    %764 = vmatprep.subr.bf16.mxu0 0
    %765 = vmatpush1.bf16.msra.mxu0 0
    %766 = vmatprep.subr.bf16.mxu0 0
    %767 = vmatpush1.bf16.msra.mxu0 0
    %768 = vmatprep.subr.bf16.mxu0 0
    %769 = vmatpush1.bf16.msra.mxu0 0
    %770 = vmatprep.subr.bf16.mxu0 0
    %771 = vmatpush1.bf16.msra.mxu0 0
    %772 = vmatprep.subr.bf16.mxu0 0
    %773 = vmatpush1.bf16.msra.mxu0 0
    %774 = vmatprep.subr.bf16.mxu0 0
    %775 = vmatpush1.bf16.msra.mxu0 0
    %776 = vmatprep.subr.bf16.mxu0 0
    %777 = vmatpush1.bf16.msra.mxu0 0
    %778 = vmatprep.mubr.bf16.mxu0 0
    %779 = vmatmul.mubr.bf16.gmra.mrb[0].mxu0 %v732
    %v780 = vpop.f32.mrb[0].mxu0
    %v781 = vadd.f32 %v489, %v780
    %v782 = vpop.f32.mrb[0].mxu0
    %v783 = vadd.f32 %v491, %v782
    %v784 = vpop.f32.mrb[0].mxu0
    %v785 = vpop.f32.mrb[0].mxu0
    %786 = vdwg.mxu0
    %787 = vmatprep.subr.bf16.mxu0 %v713
    %788 = vmatpush1.bf16.msra.mxu0 %v712
    %789 = vmatprep.subr.bf16.mxu0 %v717
    %790 = vmatpush1.bf16.msra.mxu0 %v716
    %791 = vmatprep.subr.bf16.mxu0 %v721
    %792 = vmatpush1.bf16.msra.mxu0 %v720
    %793 = vmatprep.subr.bf16.mxu0 %v725
    %794 = vmatpush1.bf16.msra.mxu0 %v724
    %795 = vmatprep.subr.bf16.mxu0 %v744
    %796 = vmatpush1.bf16.msra.mxu0 %v741
    %797 = vmatprep.subr.bf16.mxu0 0
    %798 = vmatpush1.bf16.msra.mxu0 0
    %799 = vmatprep.subr.bf16.mxu0 0
    %800 = vmatpush1.bf16.msra.mxu0 0
    %801 = vmatprep.subr.bf16.mxu0 0
    %802 = vmatpush1.bf16.msra.mxu0 0
    %803 = vmatprep.subr.bf16.mxu0 0
    %804 = vmatpush1.bf16.msra.mxu0 0
    %805 = vmatprep.subr.bf16.mxu0 0
    %806 = vmatpush1.bf16.msra.mxu0 0
    %807 = vmatprep.subr.bf16.mxu0 0
    %808 = vmatpush1.bf16.msra.mxu0 0
    %809 = vmatprep.subr.bf16.mxu0 0
    %810 = vmatpush1.bf16.msra.mxu0 0
    %811 = vmatprep.subr.bf16.mxu0 0
    %812 = vmatpush1.bf16.msra.mxu0 0
    %813 = vmatprep.subr.bf16.mxu0 0
    %814 = vmatpush1.bf16.msra.mxu0 0
    %815 = vmatprep.subr.bf16.mxu0 0
    %816 = vmatpush1.bf16.msra.mxu0 0
    %817 = vmatprep.subr.bf16.mxu0 0
    %818 = vmatpush1.bf16.msra.mxu0 0
    %819 = vmatprep.mubr.bf16.mxu0 0
    %820 = vmatmul.mubr.bf16.gmra.mrb[0].mxu0 %v732
    %v821 = vpop.f32.mrb[0].mxu0
    %v822 = vadd.f32 %v532, %v821
    %v823 = vpop.f32.mrb[0].mxu0
    %v824 = vadd.f32 %v534, %v823
    %v825 = vpop.f32.mrb[0].mxu0
    %v826 = vpop.f32.mrb[0].mxu0
    %827 = vdwg.mxu0
    %828 = vst [vmem:[#allocation2] sm:$0xff] %v781
    %829 = vst [vmem:[#allocation2 + $0x8] sm:$0xff] %v783
    %830 = vst [vmem:[#allocation2 + $0x10] sm:$0xff] %v822
    %831 = vst [vmem:[#allocation2 + $0x18] sm:$0xff] %v824
    // Predicated region
    $region18: #{tpu_custom_call.1} parent=1 // pred_check
      _
    $region19: #{tpu_custom_call.1} parent=1 // pred_check_branch
      %833 = sbr.rel (0) target = $region21
    $region20: #{tpu_custom_call.1} parent=1 // pred_region
      %s835 = ssub.s32 512, 512
      %836 = vsyncadd [#allocation3], %s835
      %s838 = sshll.u32 [#allocation2], 4
      %s839 = int_to_ptr.vmem [resolvable:$true] %s838
      %841 = dma.vmem_to_hbm [thread:$0]  %s839, 512, %s4, [#allocation3]
    $region21: #{tpu_custom_call.1} parent=1 // pred_fallthru
      _
    // Predicated region
    $region22: #{tpu_custom_call.1} parent=1 // pred_check
      _
    $region23: #{tpu_custom_call.1} parent=1 // pred_check_branch
      %843 = sbr.rel (0) target = $region25
    $region24: #{tpu_custom_call.1} parent=1 // pred_region
      %844 = dma.done [#allocation3], 512
    $region25: #{tpu_custom_call.1} parent=1 // pred_fallthru
      _
    %845 = vsyncpa [#allocation3], 1

</llo_original>
